<compile_context>
chip_gen: v5e
topology: v5e:2x2
jax: 0.10.0
libtpu: 0.0.40
codegen_flags: <defaults>
</compile_context>

<pallas_src>
import functools

import jax
import jax.numpy as jnp
import numpy as np
from jax.experimental import pallas as pl
from jax.experimental.pallas import tpu as pltpu

NEG_SLOPE = 0.2  # LeakyReLU negative slope (module default)


# --------------------------------------------------------------------------
# Kernel 1: node projection (row-tiled)
#   emb = h @ W (NaN -> 0) -> bf16 out;  scores = emb @ [AL | AR] -> (el, er)
# --------------------------------------------------------------------------
def _node_proj_kernel(h_ref, w_ref, alr_ref, emb_ref, sc_ref):
    emb = jnp.dot(h_ref[...], w_ref[...], preferred_element_type=jnp.float32)
    emb = jnp.where(jnp.isnan(emb), 0.0, emb)          # emb[isnan(emb)] = 0
    emb_ref[...] = emb.astype(emb_ref.dtype)           # bf16 for the hot path
    # NOTE: scores are computed from the f32 (NaN-zeroed) emb, so we keep the
    # two-step form instead of folding ALR into W (preserves NaN semantics).
    sc_ref[...] = jnp.dot(emb, alr_ref[...], preferred_element_type=jnp.float32)


# --------------------------------------------------------------------------
# Kernel 2 (hot path): tiled online-softmax edge attention + fused epilogue.
#   logits[dst, src, h] = LeakyReLU(el[src,h] + er[dst,h] + he_type[etype, h])
#   alpha = edge_softmax over incoming edges (mask folded into the bias)
#   agg[dst] = sum_src alpha * emb[src]            (bf16 matmul, f32 accum)
#   out = ELU(agg_interleaved + h @ W_res + b_res) (last src step only)
# --------------------------------------------------------------------------
def _attn_kernel(elT_ref, er_ref, etm_ref, emb_ref, h_ref, wres_ref, bres_ref,
                 perm_ref, he_ref, out_ref, m_scr, l_scr, acc_scr, *,
                 num_heads, out_dim, num_etypes, use_bf16_exp):
    H, D = num_heads, out_dim
    j = pl.program_id(1)                       # src (reduction) step, last axis

    @pl.when(j == 0)
    def _init():
        m_scr[...] = jnp.full_like(m_scr, -1e30)
        l_scr[...] = jnp.zeros_like(l_scr)
        acc_scr[...] = jnp.zeros_like(acc_scr)

    # ---- head-independent work, hoisted out of the per-head loop ----
    et = etm_ref[...]                                   # int8, no widening
    eqs = [et == t for t in range(num_etypes)]          # packed int8 compares
    neg = jnp.full(et.shape, -1e30, jnp.float32)        # no-edge sentinel

    el_all = elT_ref[...]                                # (H, t_src) f32
    er_all = er_ref[...]                                 # (t_dst, H) f32
    m_all = m_scr[...]
    l_all = l_scr[...]
    acc_all = acc_scr[...]

    m_cols, l_cols, acc_blocks = [], [], []
    for h in range(H):
        # per-edge-type bias; stays at -1e30 where there is no edge (mask fold)
        he_h = neg
        for t in range(num_etypes):                      # tiny, unrolled
            he_h = jnp.where(eqs[t], he_ref[t, h], he_h)  # SMEM scalar splat
        logits = el_all[h:h + 1, :] + er_all[:, h:h + 1] + he_h
        logits = jnp.maximum(logits, NEG_SLOPE * logits)  # LeakyReLU (2 ops)

        m_prev = m_all[:, h:h + 1]                        # (t_dst, 1)
        m_new = jnp.maximum(m_prev, jnp.max(logits, axis=-1, keepdims=True))
        corr = jnp.exp(m_prev - m_new)
        x = logits - m_new                                # no-edge -> -2e29
        if use_bf16_exp:                                  # v6e/v7x knob
            p = jnp.exp(x.astype(jnp.bfloat16))
            p_sum = jnp.sum(p, axis=-1, keepdims=True, dtype=jnp.float32)
        else:
            p32 = jnp.exp(x)                              # masked entries -> 0
            p = p32.astype(jnp.bfloat16)
            p_sum = jnp.sum(p32, axis=-1, keepdims=True)

        l_cols.append(corr * l_all[:, h:h + 1] + p_sum)
        emb_h = emb_ref[:, h * D:(h + 1) * D]             # bf16 (t_src, D)
        acc_blocks.append(corr * acc_all[:, h * D:(h + 1) * D]
                          + jnp.dot(p, emb_h,
                                    preferred_element_type=jnp.float32))
        m_cols.append(m_new)

    # coalesced scratch stores: one write per scratch per src step
    m_scr[...] = jnp.concatenate(m_cols, axis=-1)
    l_scr[...] = jnp.concatenate(l_cols, axis=-1)
    acc_scr[...] = jnp.concatenate(acc_blocks, axis=-1)

    @pl.when(j == pl.num_programs(1) - 1)
    def _finalize():
        m_fin = m_scr[...]
        l_fin = l_scr[...]
        # rows that never saw an edge keep m == -2e29 (bias fold); zero them.
        has = m_fin > -1e29                               # (t_dst, H)
        safe = jnp.where(l_fin > 0.0, l_fin, 1.0)
        recip = pl.reciprocal(safe, approx=True)          # EUP, not VALU divide
        acc_fin = acc_scr[...]
        blocks = []
        for h in range(H):
            blk = acc_fin[:, h * D:(h + 1) * D] * recip[:, h:h + 1]
            blocks.append(jnp.where(has[:, h:h + 1], blk, 0.0))
        # head-major (h*D+d) -> torch (d*H+h) order via tiny permutation matmul
        agg = jnp.dot(jnp.concatenate(blocks, axis=-1), perm_ref[...],
                      preferred_element_type=jnp.float32)
        res = jnp.dot(h_ref[...], wres_ref[...],
                      preferred_element_type=jnp.float32)
        x = agg + res + bres_ref[...]
        # expm1 would be marginally more precise near 0; exp(x)-1 kept for
        # conservative Mosaic lowering, error << test tolerance.
        out_ref[...] = jnp.where(x > 0.0, x, jnp.exp(x) - 1.0)   # ELU(alpha=1)


# --------------------------------------------------------------------------
# Wrapper
# --------------------------------------------------------------------------
def simple_hgn_conv(h, src, dst, etype, params, *, num_heads, out_dim,
                    edge_dim, num_etypes, t_node=None, t_dst=None, t_src=None,
                    use_bf16_exp=False):
    # Tile defaults: keep >= 2 dst tiles when possible (v7x has 2 TensorCores,
    # the dst axis is "parallel"); the src (reduction) tile can be raised to
    # 1024-2048 on v6e (128 MiB VMEM) but keep the working set < ~48 MiB on
    # v7x (64 MiB VMEM per TC).
    N, in_dim = h.shape
    H, D, Ed = num_heads, out_dim, edge_dim
    f32 = jnp.float32

    if t_node is None:
        t_node = min(1024, N)
    if t_dst is None:
        t_dst = min(256, N)
        if N // t_dst < 2 and t_dst >= 16 and N % (t_dst // 2) == 0:
            t_dst //= 2                       # ensure >= 2 dst tiles for v7x
    if t_src is None:
        t_src = min(512, N)
    t_node, t_dst, t_src = min(t_node, N), min(t_dst, N), min(t_src, N)
    assert N % t_node == 0 and N % t_dst == 0 and N % t_src == 0

    # ---- glue: block-diagonal [AL | AR] so (a * emb).sum(-1) is one matmul ----
    al, ar, ae = (params["a_l"].astype(f32), params["a_r"].astype(f32),
                  params["a_e"].astype(f32))
    eyeH = jnp.eye(H, dtype=f32)
    AL = (al[:, :, None] * eyeH[:, None, :]).reshape(H * D, H)
    AR = (ar[:, :, None] * eyeH[:, None, :]).reshape(H * D, H)
    ALR = jnp.concatenate([AL, AR], axis=1)                       # (H*D, 2H)

    emb, scores = pl.pallas_call(
        _node_proj_kernel,
        grid=(N // t_node,),
        in_specs=[pl.BlockSpec((t_node, in_dim), lambda i: (i, 0)),
                  pl.BlockSpec((in_dim, H * D), lambda i: (0, 0)),
                  pl.BlockSpec((H * D, 2 * H), lambda i: (0, 0))],
        out_specs=(pl.BlockSpec((t_node, H * D), lambda i: (i, 0)),
                   pl.BlockSpec((t_node, 2 * H), lambda i: (i, 0))),
        out_shape=(jax.ShapeDtypeStruct((N, H * D), jnp.bfloat16),
                   jax.ShapeDtypeStruct((N, 2 * H), f32)),
        compiler_params=pltpu.CompilerParams(
            dimension_semantics=("parallel",)),
    )(h.astype(f32), params["W"].astype(f32), ALR)

    elT = scores[:, :H].T                                         # (H, N) tiny
    er = scores[:, H:]                                            # (N, H)

    # ---- tiny per-edge-type attention bias table (plain JAX) ----
    proj = jnp.einsum('te,tek->tk', params["edge_emb"], params["W_r"])
    he_type = jnp.einsum('the,he->th',
                         proj.reshape(num_etypes, H, Ed), ae).astype(f32)

    # ---- dense int8 edge-type matrix (-1 = no edge) ----
    etm = jnp.full((N, N), -1, jnp.int8).at[dst, src].set(etype.astype(jnp.int8))

    # permutation: head-major (h*D+d)  ->  torch output order (d*H+h)
    perm_np = np.zeros((H * D, D * H), np.float32)
    for hh in range(H):
        for d in range(D):
            perm_np[hh * D + d, d * H + hh] = 1.0
    perm = jnp.asarray(perm_np)

    wres = params["W_res"].astype(f32)
    bres = params["b_res"].astype(f32).reshape(1, D * H)

    kernel = functools.partial(_attn_kernel, num_heads=H, out_dim=D,
                               num_etypes=num_etypes,
                               use_bf16_exp=use_bf16_exp)
    out = pl.pallas_call(
        kernel,
        grid=(N // t_dst, N // t_src),
        in_specs=[
            pl.BlockSpec((H, t_src), lambda i, j: (0, j)),          # elT (src)
            pl.BlockSpec((t_dst, H), lambda i, j: (i, 0)),          # er  (dst)
            pl.BlockSpec((t_dst, t_src), lambda i, j: (i, j)),      # etype int8
            pl.BlockSpec((t_src, H * D), lambda i, j: (j, 0)),      # emb bf16
            pl.BlockSpec((t_dst, in_dim), lambda i, j: (i, 0)),     # h   (dst)
            pl.BlockSpec((in_dim, D * H), lambda i, j: (0, 0)),     # W_res
            pl.BlockSpec((1, D * H), lambda i, j: (0, 0)),          # b_res
            pl.BlockSpec((H * D, D * H), lambda i, j: (0, 0)),      # perm
            pl.BlockSpec(memory_space=pltpu.MemorySpace.SMEM),      # he_type
        ],
        out_specs=pl.BlockSpec((t_dst, D * H), lambda i, j: (i, 0)),
        out_shape=jax.ShapeDtypeStruct((N, D * H), f32),
        scratch_shapes=[pltpu.VMEM((t_dst, H), f32),       # running max
                        pltpu.VMEM((t_dst, H), f32),       # running denom
                        pltpu.VMEM((t_dst, H * D), f32)],  # accumulator
        compiler_params=pltpu.CompilerParams(
            dimension_semantics=("parallel", "arbitrary"),
            vmem_limit_bytes=48 * 1024 * 1024),
    )(elT, er, etm, emb, h.astype(f32), wres, bres, perm, he_type)
    return out


# --------------------------------------------------------------------------
# Plain-JAX reference (edge-wise, mirrors the PyTorch forward).
# --------------------------------------------------------------------------
def reference(h, src, dst, etype, params, *, num_heads, out_dim, edge_dim):
    N = h.shape[0]
    H, D, Ed = num_heads, out_dim, edge_dim
    emb = jnp.where(jnp.isnan(h @ params["W"]), 0.0, h @ params["W"])
    emb = emb.reshape(N, H, D)
    el = (params["a_l"][None] * emb).sum(-1)
    er = (params["a_r"][None] * emb).sum(-1)
    efeat = jnp.einsum('ed,edk->ek', params["edge_emb"][etype],
                       params["W_r"][etype]).reshape(-1, H, Ed)
    he = (params["a_e"][None] * efeat).sum(-1)
    logits = el[src] + er[dst] + he
    logits = jnp.where(logits >= 0, logits, NEG_SLOPE * logits)
    m = jax.ops.segment_max(logits, dst, num_segments=N)
    p = jnp.exp(logits - m[dst])
    s = jax.ops.segment_sum(p, dst, num_segments=N)
    alpha = p / s[dst]
    msg = emb[src] * alpha[:, :, None]
    agg = jax.ops.segment_sum(msg, dst, num_segments=N)            # (N, H, D)
    agg_flat = jnp.transpose(agg, (0, 2, 1)).reshape(N, D * H)
    res = h @ params["W_res"] + params["b_res"]
    return jax.nn.elu(agg_flat + res)


if __name__ == "__main__":
    N, in_dim, out_dim, num_heads = 256, 64, 16, 4
    edge_dim, num_etypes, E = 8, 3, 2048

    key = jax.random.PRNGKey(0)
    ks = jax.random.split(key, 10)

    def xavier(k, shape, gain=1.414):
        fan_in, fan_out = shape[-2], shape[-1]
        a = gain * np.sqrt(6.0 / (fan_in + fan_out))
        return jax.random.uniform(k, shape, jnp.float32, -a, a)

    params = {
        "W": xavier(ks[0], (in_dim, out_dim * num_heads)),
        "a_l": xavier(ks[1], (num_heads, out_dim)),
        "a_r": xavier(ks[2], (num_heads, out_dim)),
        "a_e": xavier(ks[3], (num_heads, edge_dim)),
        "edge_emb": xavier(ks[4], (num_etypes, edge_dim)),
        "W_r": xavier(ks[5], (num_etypes, edge_dim, edge_dim * num_heads)),
        "W_res": xavier(ks[6], (in_dim, out_dim * num_heads)),
        "b_res": 0.1 * jax.random.normal(ks[9], (1, out_dim * num_heads),
                                         jnp.float32),
    }

    h = jax.random.normal(ks[7], (N, in_dim), jnp.float32)
    # simple graph: E unique (src, dst) pairs + random edge types
    perm = jax.random.permutation(ks[8], N * N)[:E]
    src = (perm // N).astype(jnp.int32)
    dst = (perm % N).astype(jnp.int32)
    etype = jax.random.randint(ks[9], (E,), 0, num_etypes, jnp.int32)

    out = simple_hgn_conv(h, src, dst, etype, params,
                          num_heads=num_heads, out_dim=out_dim,
                          edge_dim=edge_dim, num_etypes=num_etypes,
                          t_node=256, t_dst=128, t_src=128)
    out = jax.block_until_ready(out)

    ref = reference(h, src, dst, etype, params, num_heads=num_heads,
                    out_dim=out_dim, edge_dim=edge_dim)
    np.testing.assert_allclose(np.asarray(out), np.asarray(ref),
                               rtol=2e-2, atol=2e-2)
    print("KERNEL_OK")
</pallas_src>

<mosaic_0001>
module attributes {stable_mosaic.version = 11 : i64} {
  func.func @_node_proj_kernel(%arg0: i32, %arg1: memref<256x64xf32, #tpu.memory_space<vmem>>, %arg2: memref<64x64xf32, #tpu.memory_space<vmem>>, %arg3: memref<64x8xf32, #tpu.memory_space<vmem>>, %arg4: memref<256x64xbf16, #tpu.memory_space<vmem>>, %arg5: memref<256x8xf32, #tpu.memory_space<vmem>>) attributes {dimension_semantics = [#tpu.dimension_semantics<parallel>], iteration_bounds = array<i64: 1>, scalar_prefetch = 0 : i64, scratch_operands = 0 : i64, tpu.core_type = #tpu.core_type<tc>, window_params = [{transform_indices = @transform_0, window_bounds = array<i64: 256, 64>}, {pipeline_mode = #tpu.pipeline_mode<synchronous>, transform_indices = @transform_1, window_bounds = array<i64: 64, 64>}, {pipeline_mode = #tpu.pipeline_mode<synchronous>, transform_indices = @transform_2, window_bounds = array<i64: 64, 8>}, {transform_indices = @transform_3, window_bounds = array<i64: 256, 64>}, {transform_indices = @transform_4, window_bounds = array<i64: 256, 8>}]} {
    %c0 = arith.constant 0 : index
    %c0_0 = arith.constant 0 : index
    %0 = vector.load %arg1[%c0, %c0_0] : memref<256x64xf32, #tpu.memory_space<vmem>>, vector<256x64xf32>
    %c0_1 = arith.constant 0 : index
    %c0_2 = arith.constant 0 : index
    %1 = vector.load %arg2[%c0_1, %c0_2] : memref<64x64xf32, #tpu.memory_space<vmem>>, vector<64x64xf32>
    %cst = arith.constant dense<0.000000e+00> : vector<256x64xf32>
    %2 = tpu.matmul %0, %1, %cst {dimension_numbers = #tpu.dot_dimension_numbers<[1], [0], [0], [1], [0, 0, 1, 1], [], []>} : vector<256x64xf32>, vector<64x64xf32>, vector<256x64xf32> -> vector<256x64xf32>
    %3 = arith.cmpf one, %2, %2 : vector<256x64xf32>
    %cst_3 = arith.constant 0.000000e+00 : f32
    %4 = vector.broadcast %cst_3 : f32 to vector<256x64xf32>
    %5 = arith.select %3, %4, %2 : vector<256x64xi1>, vector<256x64xf32>
    %6 = arith.truncf %5 : vector<256x64xf32> to vector<256x64xbf16>
    %c0_4 = arith.constant 0 : index
    %c0_5 = arith.constant 0 : index
    %7 = vector.load %arg4[%c0_4, %c0_5] : memref<256x64xbf16, #tpu.memory_space<vmem>>, vector<256x64xbf16>
    tpu.vector_store %arg4[%c0_4, %c0_5], %6 {strides = array<i32>} : memref<256x64xbf16, #tpu.memory_space<vmem>>, vector<256x64xbf16>,
    %c0_6 = arith.constant 0 : index
    %c0_7 = arith.constant 0 : index
    %8 = vector.load %arg3[%c0_6, %c0_7] : memref<64x8xf32, #tpu.memory_space<vmem>>, vector<64x8xf32>
    %cst_8 = arith.constant dense<0.000000e+00> : vector<256x8xf32>
    %9 = tpu.matmul %5, %8, %cst_8 {dimension_numbers = #tpu.dot_dimension_numbers<[1], [0], [0], [1], [0, 0, 1, 1], [], []>} : vector<256x64xf32>, vector<64x8xf32>, vector<256x8xf32> -> vector<256x8xf32>
    %c0_9 = arith.constant 0 : index
    %c0_10 = arith.constant 0 : index
    %10 = vector.load %arg5[%c0_9, %c0_10] : memref<256x8xf32, #tpu.memory_space<vmem>>, vector<256x8xf32>
    tpu.vector_store %arg5[%c0_9, %c0_10], %9 {strides = array<i32>} : memref<256x8xf32, #tpu.memory_space<vmem>>, vector<256x8xf32>,
    return
  }
  func.func @transform_0(%arg0: i32) -> (i32, i32) {
    %c0_i32 = arith.constant 0 : i32
    %c0_i32_0 = arith.constant 0 : i32
    return %arg0, %c0_i32 : i32, i32
  }
  func.func @transform_1(%arg0: i32) -> (i32, i32) {
    %c0_i32 = arith.constant 0 : i32
    %c0_i32_0 = arith.constant 0 : i32
    %c0_i32_1 = arith.constant 0 : i32
    return %c0_i32, %c0_i32_0 : i32, i32
  }
  func.func @transform_2(%arg0: i32) -> (i32, i32) {
    %c0_i32 = arith.constant 0 : i32
    %c0_i32_0 = arith.constant 0 : i32
    %c0_i32_1 = arith.constant 0 : i32
    return %c0_i32, %c0_i32_0 : i32, i32
  }
  func.func @transform_3(%arg0: i32) -> (i32, i32) {
    %c0_i32 = arith.constant 0 : i32
    %c0_i32_0 = arith.constant 0 : i32
    return %arg0, %c0_i32 : i32, i32
  }
  func.func @transform_4(%arg0: i32) -> (i32, i32) {
    %c0_i32 = arith.constant 0 : i32
    %c0_i32_0 = arith.constant 0 : i32
    return %arg0, %c0_i32 : i32, i32
  }
}

</mosaic_0001>

<llo_original>
// kernel: tpu_custom_call.1
$region0: #{tpu_custom_call.1}
  #allocation0 [shape = 'u32[]', space=smem, size = 0x4, offset = 0x4, fixed_abs, tag = 'smem constant byte address 0x4 - core index']
  #allocation1 [shape = 'u32[72,128]{1,0:T(1,128)}', space=vmem, size = 0x9000, scoped, tag = 'internal scratch']
  %s0 = inlined_call_operand.vmem [shape: f32[256,64], index: 0, kind: input, shape index: {}]
  %s1 = inlined_call_operand.vmem [shape: f32[64,64], index: 1, kind: input, shape index: {}]
  %s2 = inlined_call_operand.vmem [shape: f32[64,8], index: 2, kind: input, shape index: {}]
  %s3 = inlined_call_operand.vmem [shape: bf16[256,64], index: 3, kind: output, shape index: {0}]
  %s4 = inlined_call_operand.vmem [shape: f32[256,8], index: 4, kind: output, shape index: {1}]
  %5 = xla_tuple %s3, %s4
  %s6 = sld [smem:[#allocation0]]
  $region30: #{tpu_custom_call.1} parent=0
    _
  %s8 = ssub.s32 1, %s6
  %s9 = scalar_select 0, %s8, %s6
  // Predicated region
  $region2: #{tpu_custom_call.1} parent=0 // pred_check
    _
  $region3: #{tpu_custom_call.1} parent=0 // pred_check_branch
    %11 = sbr.rel (0) target = $region5
  $region4: #{tpu_custom_call.1} parent=0 // pred_region
    _
  $region5: #{tpu_custom_call.1} parent=0 // pred_fallthru
    _
  // Predicated region
  $region6: #{tpu_custom_call.1} parent=0 // pred_check
    _
  $region7: #{tpu_custom_call.1} parent=0 // pred_check_branch
    %13 = sbr.rel (0) target = $region9
  $region8: #{tpu_custom_call.1} parent=0 // pred_region
    _
  $region9: #{tpu_custom_call.1} parent=0 // pred_fallthru
    _
  // Predicated region
  $region10: #{tpu_custom_call.1} parent=0 // pred_check
    _
  $region11: #{tpu_custom_call.1} parent=0 // pred_check_branch
    %15 = sbr.rel (0) target = $region13
  $region12: #{tpu_custom_call.1} parent=0 // pred_region
    _
  $region13: #{tpu_custom_call.1} parent=0 // pred_fallthru
    _
  %v16 = vld [vmem:[%s0] sm:$0xff]
  %v17 = vld [vmem:[%s0 + $0x8] sm:$0xff]
  %v18 = vld [vmem:[%s0 + $0x10] sm:$0xff]
  %v19 = vld [vmem:[%s0 + $0x18] sm:$0xff]
  %v20 = vld [vmem:[%s0 + $0x20] sm:$0xff]
  %v21 = vld [vmem:[%s0 + $0x28] sm:$0xff]
  %v22 = vld [vmem:[%s0 + $0x30] sm:$0xff]
  %v23 = vld [vmem:[%s0 + $0x38] sm:$0xff]
  %v24 = vld [vmem:[%s0 + $0x40] sm:$0xff]
  %v25 = vld [vmem:[%s0 + $0x48] sm:$0xff]
  %v26 = vld [vmem:[%s0 + $0x50] sm:$0xff]
  %v27 = vld [vmem:[%s0 + $0x58] sm:$0xff]
  %v28 = vld [vmem:[%s0 + $0x60] sm:$0xff]
  %v29 = vld [vmem:[%s0 + $0x68] sm:$0xff]
  %v30 = vld [vmem:[%s0 + $0x70] sm:$0xff]
  %v31 = vld [vmem:[%s0 + $0x78] sm:$0xff]
  %v32 = vld [vmem:[%s0 + $0x80] sm:$0xff]
  %v33 = vld [vmem:[%s0 + $0x88] sm:$0xff]
  %v34 = vld [vmem:[%s0 + $0x90] sm:$0xff]
  %v35 = vld [vmem:[%s0 + $0x98] sm:$0xff]
  %v36 = vld [vmem:[%s0 + $0xa0] sm:$0xff]
  %v37 = vld [vmem:[%s0 + $0xa8] sm:$0xff]
  %v38 = vld [vmem:[%s0 + $0xb0] sm:$0xff]
  %v39 = vld [vmem:[%s0 + $0xb8] sm:$0xff]
  %v40 = vld [vmem:[%s0 + $0xc0] sm:$0xff]
  %v41 = vld [vmem:[%s0 + $0xc8] sm:$0xff]
  %v42 = vld [vmem:[%s0 + $0xd0] sm:$0xff]
  %v43 = vld [vmem:[%s0 + $0xd8] sm:$0xff]
  %v44 = vld [vmem:[%s0 + $0xe0] sm:$0xff]
  %v45 = vld [vmem:[%s0 + $0xe8] sm:$0xff]
  %v46 = vld [vmem:[%s0 + $0xf0] sm:$0xff]
  %v47 = vld [vmem:[%s0 + $0xf8] sm:$0xff]
  %v48 = vld [vmem:[%s1] sm:$0xff]
  %v49 = vld [vmem:[%s1 + $0x8] sm:$0xff]
  %v50 = vld [vmem:[%s1 + $0x10] sm:$0xff]
  %v51 = vld [vmem:[%s1 + $0x18] sm:$0xff]
  %v52 = vld [vmem:[%s1 + $0x20] sm:$0xff]
  %v53 = vld [vmem:[%s1 + $0x28] sm:$0xff]
  %v54 = vld [vmem:[%s1 + $0x30] sm:$0xff]
  %v55 = vld [vmem:[%s1 + $0x38] sm:$0xff]
  %vm56 = vcmask 523264
  %v58 = vsel %vm56, %v16, 0
  %v61 = vsel %vm56, %v17, 0
  %v64 = vsel %vm56, %v18, 0
  %v67 = vsel %vm56, %v19, 0
  %v70 = vsel %vm56, %v20, 0
  %v73 = vsel %vm56, %v21, 0
  %v76 = vsel %vm56, %v22, 0
  %v79 = vsel %vm56, %v23, 0
  %v82 = vsel %vm56, %v24, 0
  %v85 = vsel %vm56, %v25, 0
  %v88 = vsel %vm56, %v26, 0
  %v91 = vsel %vm56, %v27, 0
  %v94 = vsel %vm56, %v28, 0
  %v97 = vsel %vm56, %v29, 0
  %v100 = vsel %vm56, %v30, 0
  %v103 = vsel %vm56, %v31, 0
  %v106 = vsel %vm56, %v32, 0
  %v109 = vsel %vm56, %v33, 0
  %v112 = vsel %vm56, %v34, 0
  %v115 = vsel %vm56, %v35, 0
  %v118 = vsel %vm56, %v36, 0
  %v121 = vsel %vm56, %v37, 0
  %v124 = vsel %vm56, %v38, 0
  %v127 = vsel %vm56, %v39, 0
  %v130 = vsel %vm56, %v40, 0
  %v133 = vsel %vm56, %v41, 0
  %v136 = vsel %vm56, %v42, 0
  %v139 = vsel %vm56, %v43, 0
  %v142 = vsel %vm56, %v44, 0
  %v145 = vsel %vm56, %v45, 0
  %v148 = vsel %vm56, %v46, 0
  %v151 = vsel %vm56, %v47, 0
  %153 = vmatpush.msra.mxu0 0.0
  %154 = vmatpush.msra.mxu0 0.0
  %155 = vmatpush.msra.mxu0 0.0
  %156 = vmatpush.msra.mxu0 0.0
  %157 = vmatpush.msra.mxu0 0.0
  %158 = vmatpush.msra.mxu0 0.0
  %159 = vmatpush.msra.mxu0 0.0
  %160 = vmatpush.msra.mxu0 0.0
  %161 = vmatpush.msra.mxu0 %v55
  %162 = vmatpush.msra.mxu0 %v54
  %163 = vmatpush.msra.mxu0 %v53
  %164 = vmatpush.msra.mxu0 %v52
  %165 = vmatpush.msra.mxu0 %v51
  %166 = vmatpush.msra.mxu0 %v50
  %167 = vmatpush.msra.mxu0 %v49
  %168 = vmatpush.msra.mxu0 %v48
  %169 = vmatmul.f32.gmra.mxu0 %v58
  %v170 = vpop.f32.mrf.mxu0
  %v171 = vadd.f32 0.0, %v170
  %172 = vmatmul.f32.gmra.mxu0 %v61
  %v173 = vpop.f32.mrf.mxu0
  %v174 = vadd.f32 0.0, %v173
  %175 = vmatmul.f32.gmra.mxu0 %v64
  %v176 = vpop.f32.mrf.mxu0
  %v177 = vadd.f32 0.0, %v176
  %178 = vmatmul.f32.gmra.mxu0 %v67
  %v179 = vpop.f32.mrf.mxu0
  %v180 = vadd.f32 0.0, %v179
  %181 = vmatmul.f32.gmra.mxu0 %v70
  %v182 = vpop.f32.mrf.mxu0
  %v183 = vadd.f32 0.0, %v182
  %184 = vmatmul.f32.gmra.mxu0 %v73
  %v185 = vpop.f32.mrf.mxu0
  %v186 = vadd.f32 0.0, %v185
  %187 = vmatmul.f32.gmra.mxu0 %v76
  %v188 = vpop.f32.mrf.mxu0
  %v189 = vadd.f32 0.0, %v188
  %190 = vmatmul.f32.gmra.mxu0 %v79
  %v191 = vpop.f32.mrf.mxu0
  %v192 = vadd.f32 0.0, %v191
  %193 = vmatmul.f32.gmra.mxu0 %v82
  %v194 = vpop.f32.mrf.mxu0
  %v195 = vadd.f32 0.0, %v194
  %196 = vmatmul.f32.gmra.mxu0 %v85
  %v197 = vpop.f32.mrf.mxu0
  %v198 = vadd.f32 0.0, %v197
  %199 = vmatmul.f32.gmra.mxu0 %v88
  %v200 = vpop.f32.mrf.mxu0
  %v201 = vadd.f32 0.0, %v200
  %202 = vmatmul.f32.gmra.mxu0 %v91
  %v203 = vpop.f32.mrf.mxu0
  %v204 = vadd.f32 0.0, %v203
  %205 = vmatmul.f32.gmra.mxu0 %v94
  %v206 = vpop.f32.mrf.mxu0
  %v207 = vadd.f32 0.0, %v206
  %208 = vmatmul.f32.gmra.mxu0 %v97
  %v209 = vpop.f32.mrf.mxu0
  %v210 = vadd.f32 0.0, %v209
  %211 = vmatmul.f32.gmra.mxu0 %v100
  %v212 = vpop.f32.mrf.mxu0
  %v213 = vadd.f32 0.0, %v212
  %214 = vmatmul.f32.gmra.mxu0 %v103
  %v215 = vpop.f32.mrf.mxu0
  %v216 = vadd.f32 0.0, %v215
  %217 = vmatmul.f32.gmra.mxu0 %v106
  %v218 = vpop.f32.mrf.mxu0
  %v219 = vadd.f32 0.0, %v218
  %220 = vmatmul.f32.gmra.mxu0 %v109
  %v221 = vpop.f32.mrf.mxu0
  %v222 = vadd.f32 0.0, %v221
  %223 = vmatmul.f32.gmra.mxu0 %v112
  %v224 = vpop.f32.mrf.mxu0
  %v225 = vadd.f32 0.0, %v224
  %226 = vmatmul.f32.gmra.mxu0 %v115
  %v227 = vpop.f32.mrf.mxu0
  %v228 = vadd.f32 0.0, %v227
  %229 = vmatmul.f32.gmra.mxu0 %v118
  %v230 = vpop.f32.mrf.mxu0
  %v231 = vadd.f32 0.0, %v230
  %232 = vmatmul.f32.gmra.mxu0 %v121
  %v233 = vpop.f32.mrf.mxu0
  %v234 = vadd.f32 0.0, %v233
  %235 = vmatmul.f32.gmra.mxu0 %v124
  %v236 = vpop.f32.mrf.mxu0
  %v237 = vadd.f32 0.0, %v236
  %238 = vmatmul.f32.gmra.mxu0 %v127
  %v239 = vpop.f32.mrf.mxu0
  %v240 = vadd.f32 0.0, %v239
  %241 = vmatmul.f32.gmra.mxu0 %v130
  %v242 = vpop.f32.mrf.mxu0
  %v243 = vadd.f32 0.0, %v242
  %244 = vmatmul.f32.gmra.mxu0 %v133
  %v245 = vpop.f32.mrf.mxu0
  %v246 = vadd.f32 0.0, %v245
  %247 = vmatmul.f32.gmra.mxu0 %v136
  %v248 = vpop.f32.mrf.mxu0
  %v249 = vadd.f32 0.0, %v248
  %250 = vmatmul.f32.gmra.mxu0 %v139
  %v251 = vpop.f32.mrf.mxu0
  %v252 = vadd.f32 0.0, %v251
  %253 = vmatmul.f32.gmra.mxu0 %v142
  %v254 = vpop.f32.mrf.mxu0
  %v255 = vadd.f32 0.0, %v254
  %256 = vmatmul.f32.gmra.mxu0 %v145
  %v257 = vpop.f32.mrf.mxu0
  %v258 = vadd.f32 0.0, %v257
  %259 = vmatmul.f32.gmra.mxu0 %v148
  %v260 = vpop.f32.mrf.mxu0
  %v261 = vadd.f32 0.0, %v260
  %262 = vmatmul.f32.gmra.mxu0 %v151
  %v263 = vpop.f32.mrf.mxu0
  %v264 = vadd.f32 0.0, %v263
  %265 = vdwg.mxu0
  %vm266 = vcmp.ne.f32.partialorder %v171, %v171
  %vm267 = vcmp.ne.f32.partialorder %v174, %v174
  %vm268 = vcmp.ne.f32.partialorder %v177, %v177
  %vm269 = vcmp.ne.f32.partialorder %v180, %v180
  %vm270 = vcmp.ne.f32.partialorder %v183, %v183
  %vm271 = vcmp.ne.f32.partialorder %v186, %v186
  %vm272 = vcmp.ne.f32.partialorder %v189, %v189
  %vm273 = vcmp.ne.f32.partialorder %v192, %v192
  %vm274 = vcmp.ne.f32.partialorder %v195, %v195
  %vm275 = vcmp.ne.f32.partialorder %v198, %v198
  %vm276 = vcmp.ne.f32.partialorder %v201, %v201
  %vm277 = vcmp.ne.f32.partialorder %v204, %v204
  %vm278 = vcmp.ne.f32.partialorder %v207, %v207
  %vm279 = vcmp.ne.f32.partialorder %v210, %v210
  %vm280 = vcmp.ne.f32.partialorder %v213, %v213
  %vm281 = vcmp.ne.f32.partialorder %v216, %v216
  %vm282 = vcmp.ne.f32.partialorder %v219, %v219
  %vm283 = vcmp.ne.f32.partialorder %v222, %v222
  %vm284 = vcmp.ne.f32.partialorder %v225, %v225
  %vm285 = vcmp.ne.f32.partialorder %v228, %v228
  %vm286 = vcmp.ne.f32.partialorder %v231, %v231
  %vm287 = vcmp.ne.f32.partialorder %v234, %v234
  %vm288 = vcmp.ne.f32.partialorder %v237, %v237
  %vm289 = vcmp.ne.f32.partialorder %v240, %v240
  %vm290 = vcmp.ne.f32.partialorder %v243, %v243
  %vm291 = vcmp.ne.f32.partialorder %v246, %v246
  %vm292 = vcmp.ne.f32.partialorder %v249, %v249
  %vm293 = vcmp.ne.f32.partialorder %v252, %v252
  %vm294 = vcmp.ne.f32.partialorder %v255, %v255
  %vm295 = vcmp.ne.f32.partialorder %v258, %v258
  %vm296 = vcmp.ne.f32.partialorder %v261, %v261
  %vm297 = vcmp.ne.f32.partialorder %v264, %v264
  %v298 = vsel %vm266, 0.0, %v171
  %v299 = vsel %vm267, 0.0, %v174
  %v300 = vsel %vm268, 0.0, %v177
  %v301 = vsel %vm269, 0.0, %v180
  %v302 = vsel %vm270, 0.0, %v183
  %v303 = vsel %vm271, 0.0, %v186
  %v304 = vsel %vm272, 0.0, %v189
  %v305 = vsel %vm273, 0.0, %v192
  %v306 = vsel %vm274, 0.0, %v195
  %v307 = vsel %vm275, 0.0, %v198
  %v308 = vsel %vm276, 0.0, %v201
  %v309 = vsel %vm277, 0.0, %v204
  %v310 = vsel %vm278, 0.0, %v207
  %v311 = vsel %vm279, 0.0, %v210
  %v312 = vsel %vm280, 0.0, %v213
  %v313 = vsel %vm281, 0.0, %v216
  %v314 = vsel %vm282, 0.0, %v219
  %v315 = vsel %vm283, 0.0, %v222
  %v316 = vsel %vm284, 0.0, %v225
  %v317 = vsel %vm285, 0.0, %v228
  %v318 = vsel %vm286, 0.0, %v231
  %v319 = vsel %vm287, 0.0, %v234
  %v320 = vsel %vm288, 0.0, %v237
  %v321 = vsel %vm289, 0.0, %v240
  %v322 = vsel %vm290, 0.0, %v243
  %v323 = vsel %vm291, 0.0, %v246
  %v324 = vsel %vm292, 0.0, %v249
  %v325 = vsel %vm293, 0.0, %v252
  %v326 = vsel %vm294, 0.0, %v255
  %v327 = vsel %vm295, 0.0, %v258
  %v328 = vsel %vm296, 0.0, %v261
  %v329 = vsel %vm297, 0.0, %v264
  %v330 = vpack.c.bf16 %v298, %v298
  %v331 = vpack.c.bf16 %v299, %v299
  %v332 = vpack.c.bf16 %v300, %v300
  %v333 = vpack.c.bf16 %v301, %v301
  %v334 = vpack.c.bf16 %v302, %v302
  %v335 = vpack.c.bf16 %v303, %v303
  %v336 = vpack.c.bf16 %v304, %v304
  %v337 = vpack.c.bf16 %v305, %v305
  %v338 = vpack.c.bf16 %v306, %v306
  %v339 = vpack.c.bf16 %v307, %v307
  %v340 = vpack.c.bf16 %v308, %v308
  %v341 = vpack.c.bf16 %v309, %v309
  %v342 = vpack.c.bf16 %v310, %v310
  %v343 = vpack.c.bf16 %v311, %v311
  %v344 = vpack.c.bf16 %v312, %v312
  %v345 = vpack.c.bf16 %v313, %v313
  %v346 = vpack.c.bf16 %v314, %v314
  %v347 = vpack.c.bf16 %v315, %v315
  %v348 = vpack.c.bf16 %v316, %v316
  %v349 = vpack.c.bf16 %v317, %v317
  %v350 = vpack.c.bf16 %v318, %v318
  %v351 = vpack.c.bf16 %v319, %v319
  %v352 = vpack.c.bf16 %v320, %v320
  %v353 = vpack.c.bf16 %v321, %v321
  %v354 = vpack.c.bf16 %v322, %v322
  %v355 = vpack.c.bf16 %v323, %v323
  %v356 = vpack.c.bf16 %v324, %v324
  %v357 = vpack.c.bf16 %v325, %v325
  %v358 = vpack.c.bf16 %v326, %v326
  %v359 = vpack.c.bf16 %v327, %v327
  %v360 = vpack.c.bf16 %v328, %v328
  %v361 = vpack.c.bf16 %v329, %v329
  %vm362 = vcmask 519168
  %363 = vst.msk [vmem:[%s3] sm:$0xf] %vm362, %v330
  %364 = vst.msk [vmem:[%s3 + $0x4] sm:$0xf] %vm362, %v331
  %365 = vst.msk [vmem:[%s3 + $0x8] sm:$0xf] %vm362, %v332
  %366 = vst.msk [vmem:[%s3 + $0xc] sm:$0xf] %vm362, %v333
  %367 = vst.msk [vmem:[%s3 + $0x10] sm:$0xf] %vm362, %v334
  %368 = vst.msk [vmem:[%s3 + $0x14] sm:$0xf] %vm362, %v335
  %369 = vst.msk [vmem:[%s3 + $0x18] sm:$0xf] %vm362, %v336
  %370 = vst.msk [vmem:[%s3 + $0x1c] sm:$0xf] %vm362, %v337
  %371 = vst.msk [vmem:[%s3 + $0x20] sm:$0xf] %vm362, %v338
  %372 = vst.msk [vmem:[%s3 + $0x24] sm:$0xf] %vm362, %v339
  %373 = vst.msk [vmem:[%s3 + $0x28] sm:$0xf] %vm362, %v340
  %374 = vst.msk [vmem:[%s3 + $0x2c] sm:$0xf] %vm362, %v341
  %375 = vst.msk [vmem:[%s3 + $0x30] sm:$0xf] %vm362, %v342
  %376 = vst.msk [vmem:[%s3 + $0x34] sm:$0xf] %vm362, %v343
  %377 = vst.msk [vmem:[%s3 + $0x38] sm:$0xf] %vm362, %v344
  %378 = vst.msk [vmem:[%s3 + $0x3c] sm:$0xf] %vm362, %v345
  %379 = vst.msk [vmem:[%s3 + $0x40] sm:$0xf] %vm362, %v346
  %380 = vst.msk [vmem:[%s3 + $0x44] sm:$0xf] %vm362, %v347
  %381 = vst.msk [vmem:[%s3 + $0x48] sm:$0xf] %vm362, %v348
  %382 = vst.msk [vmem:[%s3 + $0x4c] sm:$0xf] %vm362, %v349
  %383 = vst.msk [vmem:[%s3 + $0x50] sm:$0xf] %vm362, %v350
  %384 = vst.msk [vmem:[%s3 + $0x54] sm:$0xf] %vm362, %v351
  %385 = vst.msk [vmem:[%s3 + $0x58] sm:$0xf] %vm362, %v352
  %386 = vst.msk [vmem:[%s3 + $0x5c] sm:$0xf] %vm362, %v353
  %387 = vst.msk [vmem:[%s3 + $0x60] sm:$0xf] %vm362, %v354
  %388 = vst.msk [vmem:[%s3 + $0x64] sm:$0xf] %vm362, %v355
  %389 = vst.msk [vmem:[%s3 + $0x68] sm:$0xf] %vm362, %v356
  %390 = vst.msk [vmem:[%s3 + $0x6c] sm:$0xf] %vm362, %v357
  %391 = vst.msk [vmem:[%s3 + $0x70] sm:$0xf] %vm362, %v358
  %392 = vst.msk [vmem:[%s3 + $0x74] sm:$0xf] %vm362, %v359
  %393 = vst.msk [vmem:[%s3 + $0x78] sm:$0xf] %vm362, %v360
  %394 = vst.msk [vmem:[%s3 + $0x7c] sm:$0xf] %vm362, %v361
  %v395 = vld [vmem:[%s2] sm:$0xff]
  %v396 = vld [vmem:[%s2 + $0x8] sm:$0xff]
  %v397 = vld [vmem:[%s2 + $0x10] sm:$0xff]
  %v398 = vld [vmem:[%s2 + $0x18] sm:$0xff]
  %v399 = vld [vmem:[%s2 + $0x20] sm:$0xff]
  %v400 = vld [vmem:[%s2 + $0x28] sm:$0xff]
  %v401 = vld [vmem:[%s2 + $0x30] sm:$0xff]
  %v402 = vld [vmem:[%s2 + $0x38] sm:$0xff]
  %v404 = vsel %vm56, %v298, 0
  %v407 = vsel %vm56, %v299, 0
  %v410 = vsel %vm56, %v300, 0
  %v413 = vsel %vm56, %v301, 0
  %v416 = vsel %vm56, %v302, 0
  %v419 = vsel %vm56, %v303, 0
  %v422 = vsel %vm56, %v304, 0
  %v425 = vsel %vm56, %v305, 0
  %v428 = vsel %vm56, %v306, 0
  %v431 = vsel %vm56, %v307, 0
  %v434 = vsel %vm56, %v308, 0
  %v437 = vsel %vm56, %v309, 0
  %v440 = vsel %vm56, %v310, 0
  %v443 = vsel %vm56, %v311, 0
  %v446 = vsel %vm56, %v312, 0
  %v449 = vsel %vm56, %v313, 0
  %v452 = vsel %vm56, %v314, 0
  %v455 = vsel %vm56, %v315, 0
  %v458 = vsel %vm56, %v316, 0
  %v461 = vsel %vm56, %v317, 0
  %v464 = vsel %vm56, %v318, 0
  %v467 = vsel %vm56, %v319, 0
  %v470 = vsel %vm56, %v320, 0
  %v473 = vsel %vm56, %v321, 0
  %v476 = vsel %vm56, %v322, 0
  %v479 = vsel %vm56, %v323, 0
  %v482 = vsel %vm56, %v324, 0
  %v485 = vsel %vm56, %v325, 0
  %v488 = vsel %vm56, %v326, 0
  %v491 = vsel %vm56, %v327, 0
  %v494 = vsel %vm56, %v328, 0
  %v497 = vsel %vm56, %v329, 0
  %499 = vmatpush.msra.mxu0 0.0
  %500 = vmatpush.msra.mxu0 0.0
  %501 = vmatpush.msra.mxu0 0.0
  %502 = vmatpush.msra.mxu0 0.0
  %503 = vmatpush.msra.mxu0 0.0
  %504 = vmatpush.msra.mxu0 0.0
  %505 = vmatpush.msra.mxu0 0.0
  %506 = vmatpush.msra.mxu0 0.0
  %507 = vmatpush.msra.mxu0 %v402
  %508 = vmatpush.msra.mxu0 %v401
  %509 = vmatpush.msra.mxu0 %v400
  %510 = vmatpush.msra.mxu0 %v399
  %511 = vmatpush.msra.mxu0 %v398
  %512 = vmatpush.msra.mxu0 %v397
  %513 = vmatpush.msra.mxu0 %v396
  %514 = vmatpush.msra.mxu0 %v395
  %515 = vmatmul.f32.gmra.mxu0 %v404
  %v516 = vpop.f32.mrf.mxu0
  %v517 = vadd.f32 0.0, %v516
  %518 = vmatmul.f32.gmra.mxu0 %v407
  %v519 = vpop.f32.mrf.mxu0
  %v520 = vadd.f32 0.0, %v519
  %521 = vmatmul.f32.gmra.mxu0 %v410
  %v522 = vpop.f32.mrf.mxu0
  %v523 = vadd.f32 0.0, %v522
  %524 = vmatmul.f32.gmra.mxu0 %v413
  %v525 = vpop.f32.mrf.mxu0
  %v526 = vadd.f32 0.0, %v525
  %527 = vmatmul.f32.gmra.mxu0 %v416
  %v528 = vpop.f32.mrf.mxu0
  %v529 = vadd.f32 0.0, %v528
  %530 = vmatmul.f32.gmra.mxu0 %v419
  %v531 = vpop.f32.mrf.mxu0
  %v532 = vadd.f32 0.0, %v531
  %533 = vmatmul.f32.gmra.mxu0 %v422
  %v534 = vpop.f32.mrf.mxu0
  %v535 = vadd.f32 0.0, %v534
  %536 = vmatmul.f32.gmra.mxu0 %v425
  %v537 = vpop.f32.mrf.mxu0
  %v538 = vadd.f32 0.0, %v537
  %539 = vmatmul.f32.gmra.mxu0 %v428
  %v540 = vpop.f32.mrf.mxu0
  %v541 = vadd.f32 0.0, %v540
  %542 = vmatmul.f32.gmra.mxu0 %v431
  %v543 = vpop.f32.mrf.mxu0
  %v544 = vadd.f32 0.0, %v543
  %545 = vmatmul.f32.gmra.mxu0 %v434
  %v546 = vpop.f32.mrf.mxu0
  %v547 = vadd.f32 0.0, %v546
  %548 = vmatmul.f32.gmra.mxu0 %v437
  %v549 = vpop.f32.mrf.mxu0
  %v550 = vadd.f32 0.0, %v549
  %551 = vmatmul.f32.gmra.mxu0 %v440
  %v552 = vpop.f32.mrf.mxu0
  %v553 = vadd.f32 0.0, %v552
  %554 = vmatmul.f32.gmra.mxu0 %v443
  %v555 = vpop.f32.mrf.mxu0
  %v556 = vadd.f32 0.0, %v555
  %557 = vmatmul.f32.gmra.mxu0 %v446
  %v558 = vpop.f32.mrf.mxu0
  %v559 = vadd.f32 0.0, %v558
  %560 = vmatmul.f32.gmra.mxu0 %v449
  %v561 = vpop.f32.mrf.mxu0
  %v562 = vadd.f32 0.0, %v561
  %563 = vmatmul.f32.gmra.mxu0 %v452
  %v564 = vpop.f32.mrf.mxu0
  %v565 = vadd.f32 0.0, %v564
  %566 = vmatmul.f32.gmra.mxu0 %v455
  %v567 = vpop.f32.mrf.mxu0
  %v568 = vadd.f32 0.0, %v567
  %569 = vmatmul.f32.gmra.mxu0 %v458
  %v570 = vpop.f32.mrf.mxu0
  %v571 = vadd.f32 0.0, %v570
  %572 = vmatmul.f32.gmra.mxu0 %v461
  %v573 = vpop.f32.mrf.mxu0
  %v574 = vadd.f32 0.0, %v573
  %575 = vmatmul.f32.gmra.mxu0 %v464
  %v576 = vpop.f32.mrf.mxu0
  %v577 = vadd.f32 0.0, %v576
  %578 = vmatmul.f32.gmra.mxu0 %v467
  %v579 = vpop.f32.mrf.mxu0
  %v580 = vadd.f32 0.0, %v579
  %581 = vmatmul.f32.gmra.mxu0 %v470
  %v582 = vpop.f32.mrf.mxu0
  %v583 = vadd.f32 0.0, %v582
  %584 = vmatmul.f32.gmra.mxu0 %v473
  %v585 = vpop.f32.mrf.mxu0
  %v586 = vadd.f32 0.0, %v585
  %587 = vmatmul.f32.gmra.mxu0 %v476
  %v588 = vpop.f32.mrf.mxu0
  %v589 = vadd.f32 0.0, %v588
  %590 = vmatmul.f32.gmra.mxu0 %v479
  %v591 = vpop.f32.mrf.mxu0
  %v592 = vadd.f32 0.0, %v591
  %593 = vmatmul.f32.gmra.mxu0 %v482
  %v594 = vpop.f32.mrf.mxu0
  %v595 = vadd.f32 0.0, %v594
  %596 = vmatmul.f32.gmra.mxu0 %v485
  %v597 = vpop.f32.mrf.mxu0
  %v598 = vadd.f32 0.0, %v597
  %599 = vmatmul.f32.gmra.mxu0 %v488
  %v600 = vpop.f32.mrf.mxu0
  %v601 = vadd.f32 0.0, %v600
  %602 = vmatmul.f32.gmra.mxu0 %v491
  %v603 = vpop.f32.mrf.mxu0
  %v604 = vadd.f32 0.0, %v603
  %605 = vmatmul.f32.gmra.mxu0 %v494
  %v606 = vpop.f32.mrf.mxu0
  %v607 = vadd.f32 0.0, %v606
  %608 = vmatmul.f32.gmra.mxu0 %v497
  %v609 = vpop.f32.mrf.mxu0
  %v610 = vadd.f32 0.0, %v609
  %611 = vdwg.mxu0
  %vm612 = vcmask 64512
  %613 = vst.msk [vmem:[%s4] sm:$0xff] %vm612, %v517
  %614 = vst.msk [vmem:[%s4 + $0x8] sm:$0xff] %vm612, %v520
  %615 = vst.msk [vmem:[%s4 + $0x10] sm:$0xff] %vm612, %v523
  %616 = vst.msk [vmem:[%s4 + $0x18] sm:$0xff] %vm612, %v526
  %617 = vst.msk [vmem:[%s4 + $0x20] sm:$0xff] %vm612, %v529
  %618 = vst.msk [vmem:[%s4 + $0x28] sm:$0xff] %vm612, %v532
  %619 = vst.msk [vmem:[%s4 + $0x30] sm:$0xff] %vm612, %v535
  %620 = vst.msk [vmem:[%s4 + $0x38] sm:$0xff] %vm612, %v538
  %621 = vst.msk [vmem:[%s4 + $0x40] sm:$0xff] %vm612, %v541
  %622 = vst.msk [vmem:[%s4 + $0x48] sm:$0xff] %vm612, %v544
  %623 = vst.msk [vmem:[%s4 + $0x50] sm:$0xff] %vm612, %v547
  %624 = vst.msk [vmem:[%s4 + $0x58] sm:$0xff] %vm612, %v550
  %625 = vst.msk [vmem:[%s4 + $0x60] sm:$0xff] %vm612, %v553
  %626 = vst.msk [vmem:[%s4 + $0x68] sm:$0xff] %vm612, %v556
  %627 = vst.msk [vmem:[%s4 + $0x70] sm:$0xff] %vm612, %v559
  %628 = vst.msk [vmem:[%s4 + $0x78] sm:$0xff] %vm612, %v562
  %629 = vst.msk [vmem:[%s4 + $0x80] sm:$0xff] %vm612, %v565
  %630 = vst.msk [vmem:[%s4 + $0x88] sm:$0xff] %vm612, %v568
  %631 = vst.msk [vmem:[%s4 + $0x90] sm:$0xff] %vm612, %v571
  %632 = vst.msk [vmem:[%s4 + $0x98] sm:$0xff] %vm612, %v574
  %633 = vst.msk [vmem:[%s4 + $0xa0] sm:$0xff] %vm612, %v577
  %634 = vst.msk [vmem:[%s4 + $0xa8] sm:$0xff] %vm612, %v580
  %635 = vst.msk [vmem:[%s4 + $0xb0] sm:$0xff] %vm612, %v583
  %636 = vst.msk [vmem:[%s4 + $0xb8] sm:$0xff] %vm612, %v586
  %637 = vst.msk [vmem:[%s4 + $0xc0] sm:$0xff] %vm612, %v589
  %638 = vst.msk [vmem:[%s4 + $0xc8] sm:$0xff] %vm612, %v592
  %639 = vst.msk [vmem:[%s4 + $0xd0] sm:$0xff] %vm612, %v595
  %640 = vst.msk [vmem:[%s4 + $0xd8] sm:$0xff] %vm612, %v598
  %641 = vst.msk [vmem:[%s4 + $0xe0] sm:$0xff] %vm612, %v601
  %642 = vst.msk [vmem:[%s4 + $0xe8] sm:$0xff] %vm612, %v604
  %643 = vst.msk [vmem:[%s4 + $0xf0] sm:$0xff] %vm612, %v607
  %644 = vst.msk [vmem:[%s4 + $0xf8] sm:$0xff] %vm612, %v610
  // Predicated region
  $region14: #{tpu_custom_call.1} parent=0 // pred_check
    _
  $region15: #{tpu_custom_call.1} parent=0 // pred_check_branch
    %646 = sbr.rel (0) target = $region17
  $region16: #{tpu_custom_call.1} parent=0 // pred_region
    _
  $region17: #{tpu_custom_call.1} parent=0 // pred_fallthru
    _
  // Predicated region
  $region18: #{tpu_custom_call.1} parent=0 // pred_check
    _
  $region19: #{tpu_custom_call.1} parent=0 // pred_check_branch
    %648 = sbr.rel (0) target = $region21
  $region20: #{tpu_custom_call.1} parent=0 // pred_region
    _
  $region21: #{tpu_custom_call.1} parent=0 // pred_fallthru
    _
  // Predicated region
  $region22: #{tpu_custom_call.1} parent=0 // pred_check
    _
  $region23: #{tpu_custom_call.1} parent=0 // pred_check_branch
    %650 = sbr.rel (0) target = $region25
  $region24: #{tpu_custom_call.1} parent=0 // pred_region
    _
  $region25: #{tpu_custom_call.1} parent=0 // pred_fallthru
    _
  // Predicated region
  $region26: #{tpu_custom_call.1} parent=0 // pred_check
    _
  $region27: #{tpu_custom_call.1} parent=0 // pred_check_branch
    %652 = sbr.rel (0) target = $region29
  $region28: #{tpu_custom_call.1} parent=0 // pred_region
    _
  $region29: #{tpu_custom_call.1} parent=0 // pred_fallthru
    _

</llo_original>
